<compile_context>
chip_gen: v5e
topology: v5e:2x2
jax: 0.10.0
libtpu: 0.0.40
codegen_flags: <defaults>
</compile_context>

<pallas_src>
import jax
import jax.numpy as jnp
from jax.experimental import pallas as pl
from jax.experimental.pallas import tpu as pltpu

# ---------------- configuration (small shapes consistent with the module) ----
VOCAB_SIZE = 50
VOCAB_PAD = 128                     # lane-dense one-hot / full MXU column
EMBED_DIM = 32
KERNEL_SIZES = (3, 4, 5)
MAX_K = max(KERNEL_SIZES)           # 5 shift blocks
NUM_FILTERS = 32
NUM_GROUPS = len(KERNEL_SIZES)      # 3
OUT_LANES = 128                     # 3 groups * 32 filters, padded to 128 lanes
NUM_CLASSES = 2
BATCH = 2
SEQ = 16
BS = BATCH * SEQ                    # 32 rows
BIAS_ID = VOCAB_PAD - 1             # unreachable vocab id -> always-on bias col
ONEHOT_W = MAX_K * VOCAB_PAD        # 640 contraction columns


def _textcnn_kernel(tok_ref, wf_ref, mask_ref, fcw_ref, fcb_ref, out_ref,
                    onehot_ref):
    """tok (BS,1) i32 | wf (640,128) | mask (BS,128) | fcw (128,2) | fcb (1,2)."""
    # --- shifted one-hot assembly (VPU compares + aligned lane-tile stores) ---
    tok = tok_ref[...]                                              # (BS, 1)
    vocab = jax.lax.broadcasted_iota(jnp.int32, (BS, VOCAB_PAD), 1)
    base = (vocab == tok).astype(jnp.float32)                       # (BS, 128)
    always_on = (vocab == BIAS_ID).astype(jnp.float32)               # bias col

    onehot_ref[:, 0:VOCAB_PAD] = base + always_on                   # shift j=0
    for j in range(1, MAX_K):                                       # shifts 1..4
        lo, hi = j * VOCAB_PAD, (j + 1) * VOCAB_PAD
        onehot_ref[:, lo:hi] = jnp.zeros((BS, VOCAB_PAD), jnp.float32)
        # Row r of block j holds the one-hot of the token at flat position r+j;
        # zeroed tail rows only reach time steps the validity mask removes.
        onehot_ref[0:BS - j, lo:hi] = base[j:BS, :]

    # --- embedding + all convs + tap-sum + conv bias: ONE MXU matmul ----------
    z = jnp.dot(onehot_ref[...], wf_ref[...],
                preferred_element_type=jnp.float32)                  # (BS, 128)

    # --- relu, zero invalid/padded time steps (safe: relu >= 0), max-over-time
    z = jnp.maximum(z, 0.0) * mask_ref[...]
    pooled = jnp.max(z.reshape(BATCH, SEQ, OUT_LANES), axis=1)       # (B, 128)

    # --- dropout == identity (eval); single fused, lane-padded FC matmul ------
    logits = jnp.dot(pooled, fcw_ref[...], preferred_element_type=jnp.float32)
    out_ref[...] = (logits + fcb_ref[...]).astype(out_ref.dtype)     # (B, 2)


def prepare_params(params):
    """One-time offline packing: fold embedding table, conv taps and conv
    biases into one fused weight slab, pad FC weights to 128 lanes, and
    precompute the time-validity mask."""
    f32 = jnp.float32
    hi = jax.lax.Precision.HIGHEST
    F = NUM_FILTERS

    table = jnp.zeros((VOCAB_PAD, EMBED_DIM), f32)
    table = table.at[:VOCAB_SIZE].set(params["embedding"].astype(f32))

    # W_fused[j*128 + v, g*32 + f] = sum_e table[v, e] * conv_g_w[f, 0, j, e]
    wf = jnp.zeros((ONEHOT_W, OUT_LANES), f32)
    for g, k in enumerate(KERNEL_SIZES):
        w = params[f"conv{k}_w"].astype(f32)[:, 0, :, :]             # (F, k, E)
        for j in range(k):
            col = jnp.dot(table, w[:, j, :].T, precision=hi)         # (128, F)
            wf = wf.at[j * VOCAB_PAD:(j + 1) * VOCAB_PAD,
                       g * F:(g + 1) * F].set(col)
        # Conv bias rides on the always-on column (vocab id 127, shift 0).
        wf = wf.at[BIAS_ID, g * F:(g + 1) * F].set(
            params[f"conv{k}_b"].astype(f32))

    # mask[(b,t), lane] = 1 if t < SEQ - k_g + 1 for that lane's group, else 0
    t = jnp.arange(SEQ)
    lane_group = jnp.arange(OUT_LANES) // F                          # 0..3
    valid_len = jnp.array([SEQ - k + 1 for k in KERNEL_SIZES] + [0], jnp.int32)
    mask = (t[:, None] < valid_len[lane_group][None, :]).astype(f32)
    mask = jnp.tile(mask, (BATCH, 1))                                # (BS, 128)

    fcw = jnp.zeros((OUT_LANES, NUM_CLASSES), f32)
    fcw = fcw.at[:NUM_GROUPS * F, :].set(params["fc_w"].astype(f32).T)
    fcb = params["fc_b"].astype(f32).reshape(1, NUM_CLASSES)
    return {"wfused": wf, "mask": mask, "fcw": fcw, "fcb": fcb}


@jax.jit
def textcnn_forward(x_tokens, prepped):
    """x_tokens: (B, S) int token ids.  Returns logits (B, 2) float32."""
    # Contiguous row-major (B,S)->(B*S,1) reshape is a free bitcast, so no
    # standalone relayout HLO is dispatched ahead of the pallas_call.
    tok = x_tokens.astype(jnp.int32).reshape(BS, 1)
    vmem = pl.BlockSpec(memory_space=pltpu.MemorySpace.VMEM)
    return pl.pallas_call(
        _textcnn_kernel,
        out_shape=jax.ShapeDtypeStruct((BATCH, NUM_CLASSES), jnp.float32),
        in_specs=[vmem] * 5,
        out_specs=vmem,
        scratch_shapes=[pltpu.VMEM((BS, ONEHOT_W), jnp.float32)],
    )(tok, prepped["wfused"], prepped["mask"], prepped["fcw"], prepped["fcb"])


def _reference_forward(x_tokens, params):
    """Pure-JAX reference mirroring the PyTorch forward (eval mode)."""
    hi = jax.lax.Precision.HIGHEST
    emb = params["embedding"][x_tokens].astype(jnp.float32)          # (B, S, E)
    pooled = []
    for k in KERNEL_SIZES:
        w = params[f"conv{k}_w"][:, 0, :, :]                         # (F, k, E)
        b = params[f"conv{k}_b"]                                     # (F,)
        L = SEQ - k + 1
        acc = jnp.zeros((BATCH, L, NUM_FILTERS), jnp.float32)
        for j in range(k):
            acc = acc + jnp.einsum("ble,fe->blf", emb[:, j:j + L, :],
                                   w[:, j, :], precision=hi)
        acc = jax.nn.relu(acc + b[None, None, :])
        pooled.append(jnp.max(acc, axis=1))                          # (B, F)
    feats = jnp.concatenate(pooled, axis=1)                          # (B, 3F)
    return jnp.dot(feats, params["fc_w"].T, precision=hi) + params["fc_b"]


def _init_params(key):
    ks = jax.random.split(key, 2 + 2 * len(KERNEL_SIZES) + 2)
    params = {
        "embedding": 0.1 * jax.random.normal(ks[0], (VOCAB_SIZE, EMBED_DIM),
                                             jnp.float32),
        "fc_w": 0.1 * jax.random.normal(ks[1],
                                        (NUM_CLASSES,
                                         NUM_FILTERS * len(KERNEL_SIZES)),
                                        jnp.float32),
        "fc_b": 0.01 * jnp.arange(NUM_CLASSES, dtype=jnp.float32),
    }
    for i, k in enumerate(KERNEL_SIZES):
        params[f"conv{k}_w"] = 0.1 * jax.random.normal(
            ks[2 + 2 * i], (NUM_FILTERS, 1, k, EMBED_DIM), jnp.float32)
        params[f"conv{k}_b"] = 0.05 * jax.random.normal(
            ks[3 + 2 * i], (NUM_FILTERS,), jnp.float32)
    return params


if __name__ == "__main__":
    key = jax.random.PRNGKey(0)
    k_tok, k_par = jax.random.split(key)
    x = jax.random.randint(k_tok, (BATCH, SEQ), 0, VOCAB_SIZE, dtype=jnp.int32)
    params = _init_params(k_par)

    prepped = prepare_params(params)            # one-time model-load packing
    logits = jax.block_until_ready(textcnn_forward(x, prepped))

    ref = _reference_forward(x, params)
    assert logits.shape == (BATCH, NUM_CLASSES)
    assert jnp.allclose(logits, ref, atol=1e-4, rtol=1e-4), (logits, ref)
    print("KERNEL_OK")
</pallas_src>

<mosaic_0001>
module attributes {stable_mosaic.version = 11 : i64} {
  func.func @_textcnn_kernel(%arg0: memref<32x1xi32, #tpu.memory_space<vmem>>, %arg1: memref<640x128xf32, #tpu.memory_space<vmem>>, %arg2: memref<32x128xf32, #tpu.memory_space<vmem>>, %arg3: memref<128x2xf32, #tpu.memory_space<vmem>>, %arg4: memref<1x2xf32, #tpu.memory_space<vmem>>, %arg5: memref<2x2xf32, #tpu.memory_space<vmem>>, %arg6: memref<32x640xf32, #tpu.memory_space<vmem>>) attributes {dimension_semantics = [], scalar_prefetch = 0 : i64, scratch_operands = 1 : i64, tpu.core_type = #tpu.core_type<tc>} {
    %c0 = arith.constant 0 : index
    %c0_0 = arith.constant 0 : index
    %0 = vector.load %arg0[%c0, %c0_0] : memref<32x1xi32, #tpu.memory_space<vmem>>, vector<32x1xi32>
    %1 = tpu.iota {dimensions = array<i32: 1>} : vector<32x128xi32>
    %2 = vector.broadcast %0 : vector<32x1xi32> to vector<32x128xi32>
    %3 = arith.cmpi eq, %1, %2 : vector<32x128xi32>
    %4 = arith.extui %3 : vector<32x128xi1> to vector<32x128xi32>
    %5 = arith.sitofp %4 : vector<32x128xi32> to vector<32x128xf32>
    %c127_i32 = arith.constant 127 : i32
    %6 = vector.broadcast %c127_i32 : i32 to vector<32x128xi32>
    %7 = arith.cmpi eq, %1, %6 : vector<32x128xi32>
    %8 = arith.extui %7 : vector<32x128xi1> to vector<32x128xi32>
    %9 = arith.sitofp %8 : vector<32x128xi32> to vector<32x128xf32>
    %10 = arith.addf %5, %9 : vector<32x128xf32>
    %c0_1 = arith.constant 0 : index
    %c0_2 = arith.constant 0 : index
    %11 = vector.load %arg6[%c0_1, %c0_2] : memref<32x640xf32, #tpu.memory_space<vmem>>, vector<32x128xf32>
    tpu.vector_store %arg6[%c0_1, %c0_2], %10 {strides = array<i32>} : memref<32x640xf32, #tpu.memory_space<vmem>>, vector<32x128xf32>,
    %cst = arith.constant 0.000000e+00 : f32
    %12 = vector.broadcast %cst : f32 to vector<32x128xf32>
    %c0_3 = arith.constant 0 : index
    %c128 = arith.constant 128 : index
    %13 = vector.load %arg6[%c0_3, %c128] : memref<32x640xf32, #tpu.memory_space<vmem>>, vector<32x128xf32>
    tpu.vector_store %arg6[%c0_3, %c128], %12 {strides = array<i32>} : memref<32x640xf32, #tpu.memory_space<vmem>>, vector<32x128xf32>,
    %14 = vector.extract_strided_slice %5 {offsets = [1, 0], sizes = [31, 128], strides = [1, 1]} : vector<32x128xf32> to vector<31x128xf32>
    %c0_4 = arith.constant 0 : index
    %c128_5 = arith.constant 128 : index
    %15 = vector.load %arg6[%c0_4, %c128_5] : memref<32x640xf32, #tpu.memory_space<vmem>>, vector<31x128xf32>
    tpu.vector_store %arg6[%c0_4, %c128_5], %14 {strides = array<i32>} : memref<32x640xf32, #tpu.memory_space<vmem>>, vector<31x128xf32>,
    %cst_6 = arith.constant 0.000000e+00 : f32
    %16 = vector.broadcast %cst_6 : f32 to vector<32x128xf32>
    %c0_7 = arith.constant 0 : index
    %c256 = arith.constant 256 : index
    %17 = vector.load %arg6[%c0_7, %c256] : memref<32x640xf32, #tpu.memory_space<vmem>>, vector<32x128xf32>
    tpu.vector_store %arg6[%c0_7, %c256], %16 {strides = array<i32>} : memref<32x640xf32, #tpu.memory_space<vmem>>, vector<32x128xf32>,
    %18 = vector.extract_strided_slice %5 {offsets = [2, 0], sizes = [30, 128], strides = [1, 1]} : vector<32x128xf32> to vector<30x128xf32>
    %c0_8 = arith.constant 0 : index
    %c256_9 = arith.constant 256 : index
    %19 = vector.load %arg6[%c0_8, %c256_9] : memref<32x640xf32, #tpu.memory_space<vmem>>, vector<30x128xf32>
    tpu.vector_store %arg6[%c0_8, %c256_9], %18 {strides = array<i32>} : memref<32x640xf32, #tpu.memory_space<vmem>>, vector<30x128xf32>,
    %cst_10 = arith.constant 0.000000e+00 : f32
    %20 = vector.broadcast %cst_10 : f32 to vector<32x128xf32>
    %c0_11 = arith.constant 0 : index
    %c384 = arith.constant 384 : index
    %21 = vector.load %arg6[%c0_11, %c384] : memref<32x640xf32, #tpu.memory_space<vmem>>, vector<32x128xf32>
    tpu.vector_store %arg6[%c0_11, %c384], %20 {strides = array<i32>} : memref<32x640xf32, #tpu.memory_space<vmem>>, vector<32x128xf32>,
    %22 = vector.extract_strided_slice %5 {offsets = [3, 0], sizes = [29, 128], strides = [1, 1]} : vector<32x128xf32> to vector<29x128xf32>
    %c0_12 = arith.constant 0 : index
    %c384_13 = arith.constant 384 : index
    %23 = vector.load %arg6[%c0_12, %c384_13] : memref<32x640xf32, #tpu.memory_space<vmem>>, vector<29x128xf32>
    tpu.vector_store %arg6[%c0_12, %c384_13], %22 {strides = array<i32>} : memref<32x640xf32, #tpu.memory_space<vmem>>, vector<29x128xf32>,
    %cst_14 = arith.constant 0.000000e+00 : f32
    %24 = vector.broadcast %cst_14 : f32 to vector<32x128xf32>
    %c0_15 = arith.constant 0 : index
    %c512 = arith.constant 512 : index
    %25 = vector.load %arg6[%c0_15, %c512] : memref<32x640xf32, #tpu.memory_space<vmem>>, vector<32x128xf32>
    tpu.vector_store %arg6[%c0_15, %c512], %24 {strides = array<i32>} : memref<32x640xf32, #tpu.memory_space<vmem>>, vector<32x128xf32>,
    %26 = vector.extract_strided_slice %5 {offsets = [4, 0], sizes = [28, 128], strides = [1, 1]} : vector<32x128xf32> to vector<28x128xf32>
    %c0_16 = arith.constant 0 : index
    %c512_17 = arith.constant 512 : index
    %27 = vector.load %arg6[%c0_16, %c512_17] : memref<32x640xf32, #tpu.memory_space<vmem>>, vector<28x128xf32>
    tpu.vector_store %arg6[%c0_16, %c512_17], %26 {strides = array<i32>} : memref<32x640xf32, #tpu.memory_space<vmem>>, vector<28x128xf32>,
    %c0_18 = arith.constant 0 : index
    %c0_19 = arith.constant 0 : index
    %28 = vector.load %arg6[%c0_18, %c0_19] : memref<32x640xf32, #tpu.memory_space<vmem>>, vector<32x640xf32>
    %c0_20 = arith.constant 0 : index
    %c0_21 = arith.constant 0 : index
    %29 = vector.load %arg1[%c0_20, %c0_21] : memref<640x128xf32, #tpu.memory_space<vmem>>, vector<640x128xf32>
    %cst_22 = arith.constant dense<0.000000e+00> : vector<32x128xf32>
    %30 = tpu.matmul %28, %29, %cst_22 {dimension_numbers = #tpu.dot_dimension_numbers<[1], [0], [0], [1], [0, 0, 1, 1], [], []>} : vector<32x640xf32>, vector<640x128xf32>, vector<32x128xf32> -> vector<32x128xf32>
    %cst_23 = arith.constant 0.000000e+00 : f32
    %31 = vector.broadcast %cst_23 : f32 to vector<32x128xf32>
    %32 = arith.maximumf %30, %31 : vector<32x128xf32>
    %c0_24 = arith.constant 0 : index
    %c0_25 = arith.constant 0 : index
    %33 = vector.load %arg2[%c0_24, %c0_25] : memref<32x128xf32, #tpu.memory_space<vmem>>, vector<32x128xf32>
    %34 = arith.mulf %32, %33 : vector<32x128xf32>
    %35 = vector.shape_cast %34 : vector<32x128xf32> to vector<2x16x128xf32>
    %cst_26 = arith.constant dense<0xFF800000> : vector<2x128xf32>
    %36 = vector.multi_reduction <maximumf>, %35, %cst_26 [1] : vector<2x16x128xf32> to vector<2x128xf32>
    %c0_27 = arith.constant 0 : index
    %c0_28 = arith.constant 0 : index
    %37 = vector.load %arg3[%c0_27, %c0_28] : memref<128x2xf32, #tpu.memory_space<vmem>>, vector<128x2xf32>
    %cst_29 = arith.constant dense<0.000000e+00> : vector<2x2xf32>
    %38 = tpu.matmul %36, %37, %cst_29 {dimension_numbers = #tpu.dot_dimension_numbers<[1], [0], [0], [1], [0, 0, 1, 1], [], []>} : vector<2x128xf32>, vector<128x2xf32>, vector<2x2xf32> -> vector<2x2xf32>
    %c0_30 = arith.constant 0 : index
    %c0_31 = arith.constant 0 : index
    %39 = vector.load %arg4[%c0_30, %c0_31] : memref<1x2xf32, #tpu.memory_space<vmem>>, vector<1x2xf32>
    %40 = vector.broadcast %39 : vector<1x2xf32> to vector<2x2xf32>
    %41 = arith.addf %38, %40 : vector<2x2xf32>
    %c0_32 = arith.constant 0 : index
    %c0_33 = arith.constant 0 : index
    %42 = vector.load %arg5[%c0_32, %c0_33] : memref<2x2xf32, #tpu.memory_space<vmem>>, vector<2x2xf32>
    tpu.vector_store %arg5[%c0_32, %c0_33], %41 {strides = array<i32>} : memref<2x2xf32, #tpu.memory_space<vmem>>, vector<2x2xf32>,
    return
  }
}

</mosaic_0001>

<llo_original>
// kernel: textcnn_forward.1
$region0: #{textcnn_forward.1}
  #allocation0 [shape = 'u32[]', space=smem, size = 0x4, offset = 0x4, fixed_abs, tag = 'smem constant byte address 0x4 - core index']
  #allocation1 [shape = 'u32[72,128]{1,0:T(1,128)}', space=vmem, size = 0x9000, scoped, tag = 'internal scratch']
  #allocation2 [shape = 'f32[32,640]{1,0:T(8,128)}', space=vmem, size = 0x14000, scoped, tag = 'scratch operand']
  %s0 = inlined_call_operand.vmem [shape: s32[32,1], index: 0, kind: input, shape index: {}]
  %s1 = inlined_call_operand.hbm [shape: f32[640,128], index: 1, kind: input, shape index: {}]
  %s2 = inlined_call_operand.vmem [shape: f32[32,128], index: 2, kind: input, shape index: {}]
  %s3 = inlined_call_operand.vmem [shape: f32[128,2], index: 3, kind: input, shape index: {}]
  %s4 = inlined_call_operand.vmem [shape: f32[1,2], index: 4, kind: input, shape index: {}]
  %s5 = inlined_call_operand.hbm [shape: f32[2,2], index: 5, kind: output, shape index: {}]
  %s6 = sld [smem:[#allocation0]]
  $region34: #{textcnn_forward.1} parent=0
    _
  %s8 = ssub.s32 1, %s6
  %s9 = scalar_select 0, %s8, %s6
  $region1: #{textcnn_forward.1} parent=0
    #allocation3 [shape = 'u8[327680]{0}', space=vmem, size = 0x50000, scoped, tag = 'input window, operand 1, single buffered']
    #allocation4 [shape = 's32[1]{0}', space=sflag, size = 0x4, scoped, tag = 'scoped memory for textcnn_forward.1']
    #allocation5 [shape = 's32[1]{0}', space=sflag, size = 0x4, scoped, tag = 'scoped memory for textcnn_forward.1']
    #allocation6 [shape = 'u8[1024]{0}', space=vmem, size = 0x400, scoped, tag = 'output window, operand 0, single buffered']
    %10 = vsyncpa [#allocation4], 0
    %11 = vsyncpa [#allocation5], 0
    // Predicated region
    $region2: #{textcnn_forward.1} parent=1 // pred_check
      _
    $region3: #{textcnn_forward.1} parent=1 // pred_check_branch
      %13 = sbr.rel (0) target = $region5
    $region4: #{textcnn_forward.1} parent=1 // pred_region
      _
    $region5: #{textcnn_forward.1} parent=1 // pred_fallthru
      _
    // Predicated region
    $region6: #{textcnn_forward.1} parent=1 // pred_check
      _
    $region7: #{textcnn_forward.1} parent=1 // pred_check_branch
      %15 = sbr.rel (0) target = $region9
    $region8: #{textcnn_forward.1} parent=1 // pred_region
      %17 = vsyncadd [#allocation4], 0
      %s18 = sshll.u32 %s1, 4
      %s19 = int_to_ptr.hbm [resolvable:$true] %s18
      %s20 = sshll.u32 [#allocation3], 4
      %s21 = int_to_ptr.vmem [resolvable:$true] %s20
      %26 = dma.hbm_to_vmem [thread:$0]  %s19, 10240, %s21, [#allocation4], 128, 128, 8
    $region9: #{textcnn_forward.1} parent=1 // pred_fallthru
      _
    // Predicated region
    $region10: #{textcnn_forward.1} parent=1 // pred_check
      _
    $region11: #{textcnn_forward.1} parent=1 // pred_check_branch
      %28 = sbr.rel (0) target = $region13
    $region12: #{textcnn_forward.1} parent=1 // pred_region
      _
    $region13: #{textcnn_forward.1} parent=1 // pred_fallthru
      _
    // Predicated region
    $region14: #{textcnn_forward.1} parent=1 // pred_check
      _
    $region15: #{textcnn_forward.1} parent=1 // pred_check_branch
      %30 = sbr.rel (0) target = $region17
    $region16: #{textcnn_forward.1} parent=1 // pred_region
      _
    $region17: #{textcnn_forward.1} parent=1 // pred_fallthru
      _
    // Predicated region
    $region18: #{textcnn_forward.1} parent=1 // pred_check
      _
    $region19: #{textcnn_forward.1} parent=1 // pred_check_branch
      %32 = sbr.rel (0) target = $region21
    $region20: #{textcnn_forward.1} parent=1 // pred_region
      _
    $region21: #{textcnn_forward.1} parent=1 // pred_fallthru
      _
    // Predicated region
    $region22: #{textcnn_forward.1} parent=1 // pred_check
      _
    $region23: #{textcnn_forward.1} parent=1 // pred_check_branch
      %34 = sbr.rel (0) target = $region25
    $region24: #{textcnn_forward.1} parent=1 // pred_region
      %36 = dma.done [#allocation4], 10240
    $region25: #{textcnn_forward.1} parent=1 // pred_fallthru
      _
    %v37 = vld [vmem:[%s0] sm:$0xff]
    %v38 = vld [vmem:[%s0 + $0x8] sm:$0xff]
    %v39 = vld [vmem:[%s0 + $0x10] sm:$0xff]
    %v40 = vld [vmem:[%s0 + $0x18] sm:$0xff]
    %v41 = vlaneseq
    %v42 = vand.u32 %v41, 127
    %43 = vset.pattern.permute.xlu0 0
    %44 = vperm.xlu0 %43, %v37
    %v45 = vpop.permute.xlu0 %44
    %46 = vset.pattern.permute.xlu0 0
    %47 = vperm.xlu0 %46, %v38
    %v48 = vpop.permute.xlu0 %47
    %49 = vset.pattern.permute.xlu0 0
    %50 = vperm.xlu0 %49, %v39
    %v51 = vpop.permute.xlu0 %50
    %52 = vset.pattern.permute.xlu0 0
    %53 = vperm.xlu0 %52, %v40
    %v54 = vpop.permute.xlu0 %53
    %vm55 = vcmp.eq.s32.totalorder %v42, %v45
    %vm56 = vcmp.eq.s32.totalorder %v42, %v48
    %vm57 = vcmp.eq.s32.totalorder %v42, %v51
    %vm58 = vcmp.eq.s32.totalorder %v42, %v54
    %v59 = vsel %vm55, 1, 0
    %v60 = vsel %vm56, 1, 0
    %v61 = vsel %vm57, 1, 0
    %v62 = vsel %vm58, 1, 0
    %v63 = vcvt.s32.f32 %v59
    %v64 = vcvt.s32.f32 %v60
    %v65 = vcvt.s32.f32 %v61
    %v66 = vcvt.s32.f32 %v62
    %vm67 = vcmp.eq.s32.totalorder %v42, 127
    %v68 = vsel %vm67, 1, 0
    %v69 = vcvt.s32.f32 %v68
    %v70 = vadd.f32 %v63, %v69
    %v71 = vadd.f32 %v64, %v69
    %v72 = vadd.f32 %v65, %v69
    %v73 = vadd.f32 %v66, %v69
    %74 = vst [vmem:[#allocation2] sm:$0xff] %v70
    %75 = vst [vmem:[#allocation2 + $0x28] sm:$0xff] %v71
    %76 = vst [vmem:[#allocation2 + $0x50] sm:$0xff] %v72
    %77 = vst [vmem:[#allocation2 + $0x78] sm:$0xff] %v73
    %78 = vst [vmem:[#allocation2 + $0x8] sm:$0xff] 0.0
    %79 = vst [vmem:[#allocation2 + $0x30] sm:$0xff] 0.0
    %80 = vst [vmem:[#allocation2 + $0x58] sm:$0xff] 0.0
    %81 = vst [vmem:[#allocation2 + $0x80] sm:$0xff] 0.0
    %vm86 = vcmask 1046528
    %v87 = vrot.slane %v63, 1
    %v88 = vrot.slane %v64, 1
    %v89 = vsel %vm86, %v87, %v88
    %v90 = vrot.slane %v65, 1
    %v91 = vsel %vm86, %v88, %v90
    %v92 = vrot.slane %v66, 1
    %v93 = vsel %vm86, %v90, %v92
    %98 = vst [vmem:[#allocation2 + $0x8] sm:$0xff] %v89
    %99 = vst [vmem:[#allocation2 + $0x30] sm:$0xff] %v91
    %100 = vst [vmem:[#allocation2 + $0x58] sm:$0xff] %v93
    %101 = vst [vmem:[#allocation2 + $0x80] sm:$0x7f] %v92
    %102 = vst [vmem:[#allocation2 + $0x10] sm:$0xff] 0.0
    %103 = vst [vmem:[#allocation2 + $0x38] sm:$0xff] 0.0
    %104 = vst [vmem:[#allocation2 + $0x60] sm:$0xff] 0.0
    %105 = vst [vmem:[#allocation2 + $0x88] sm:$0xff] 0.0
    %vm106 = vcmask 1045504
    %v107 = vrot.slane %v63, 2
    %v108 = vrot.slane %v64, 2
    %v109 = vsel %vm106, %v107, %v108
    %v110 = vrot.slane %v65, 2
    %v111 = vsel %vm106, %v108, %v110
    %v112 = vrot.slane %v66, 2
    %v113 = vsel %vm106, %v110, %v112
    %118 = vst [vmem:[#allocation2 + $0x10] sm:$0xff] %v109
    %119 = vst [vmem:[#allocation2 + $0x38] sm:$0xff] %v111
    %120 = vst [vmem:[#allocation2 + $0x60] sm:$0xff] %v113
    %121 = vst [vmem:[#allocation2 + $0x88] sm:$0x3f] %v112
    %122 = vst [vmem:[#allocation2 + $0x18] sm:$0xff] 0.0
    %123 = vst [vmem:[#allocation2 + $0x40] sm:$0xff] 0.0
    %124 = vst [vmem:[#allocation2 + $0x68] sm:$0xff] 0.0
    %125 = vst [vmem:[#allocation2 + $0x90] sm:$0xff] 0.0
    %vm126 = vcmask 1044480
    %v127 = vrot.slane %v63, 3
    %v128 = vrot.slane %v64, 3
    %v129 = vsel %vm126, %v127, %v128
    %v130 = vrot.slane %v65, 3
    %v131 = vsel %vm126, %v128, %v130
    %v132 = vrot.slane %v66, 3
    %v133 = vsel %vm126, %v130, %v132
    %138 = vst [vmem:[#allocation2 + $0x18] sm:$0xff] %v129
    %139 = vst [vmem:[#allocation2 + $0x40] sm:$0xff] %v131
    %140 = vst [vmem:[#allocation2 + $0x68] sm:$0xff] %v133
    %141 = vst [vmem:[#allocation2 + $0x90] sm:$0x1f] %v132
    %142 = vst [vmem:[#allocation2 + $0x20] sm:$0xff] 0.0
    %143 = vst [vmem:[#allocation2 + $0x48] sm:$0xff] 0.0
    %144 = vst [vmem:[#allocation2 + $0x70] sm:$0xff] 0.0
    %145 = vst [vmem:[#allocation2 + $0x98] sm:$0xff] 0.0
    %vm146 = vcmask 1043456
    %v147 = vrot.slane %v63, 4
    %v148 = vrot.slane %v64, 4
    %v149 = vsel %vm146, %v147, %v148
    %v150 = vrot.slane %v65, 4
    %v151 = vsel %vm146, %v148, %v150
    %v152 = vrot.slane %v66, 4
    %v153 = vsel %vm146, %v150, %v152
    %158 = vst [vmem:[#allocation2 + $0x20] sm:$0xff] %v149
    %159 = vst [vmem:[#allocation2 + $0x48] sm:$0xff] %v151
    %160 = vst [vmem:[#allocation2 + $0x70] sm:$0xff] %v153
    %161 = vst [vmem:[#allocation2 + $0x98] sm:$0xf] %v152
    %v162 = vld [vmem:[#allocation2] sm:$0xff]
    %v163 = vld [vmem:[#allocation2 + $0x8] sm:$0xff]
    %v164 = vld [vmem:[#allocation2 + $0x10] sm:$0xff]
    %v165 = vld [vmem:[#allocation2 + $0x18] sm:$0xff]
    %v166 = vld [vmem:[#allocation2 + $0x20] sm:$0xff]
    %v167 = vld [vmem:[#allocation2 + $0x28] sm:$0xff]
    %v168 = vld [vmem:[#allocation2 + $0x30] sm:$0xff]
    %v169 = vld [vmem:[#allocation2 + $0x38] sm:$0xff]
    %v170 = vld [vmem:[#allocation2 + $0x40] sm:$0xff]
    %v171 = vld [vmem:[#allocation2 + $0x48] sm:$0xff]
    %v172 = vld [vmem:[#allocation2 + $0x50] sm:$0xff]
    %v173 = vld [vmem:[#allocation2 + $0x58] sm:$0xff]
    %v174 = vld [vmem:[#allocation2 + $0x60] sm:$0xff]
    %v175 = vld [vmem:[#allocation2 + $0x68] sm:$0xff]
    %v176 = vld [vmem:[#allocation2 + $0x70] sm:$0xff]
    %v177 = vld [vmem:[#allocation2 + $0x78] sm:$0xff]
    %v178 = vld [vmem:[#allocation2 + $0x80] sm:$0xff]
    %v179 = vld [vmem:[#allocation2 + $0x88] sm:$0xff]
    %v180 = vld [vmem:[#allocation2 + $0x90] sm:$0xff]
    %v181 = vld [vmem:[#allocation2 + $0x98] sm:$0xff]
    %v182 = vld [vmem:[#allocation3] sm:$0xff]
    %v183 = vld [vmem:[#allocation3 + $0x8] sm:$0xff]
    %v184 = vld [vmem:[#allocation3 + $0x10] sm:$0xff]
    %v185 = vld [vmem:[#allocation3 + $0x18] sm:$0xff]
    %v186 = vld [vmem:[#allocation3 + $0x20] sm:$0xff]
    %v187 = vld [vmem:[#allocation3 + $0x28] sm:$0xff]
    %v188 = vld [vmem:[#allocation3 + $0x30] sm:$0xff]
    %v189 = vld [vmem:[#allocation3 + $0x38] sm:$0xff]
    %v190 = vld [vmem:[#allocation3 + $0x40] sm:$0xff]
    %v191 = vld [vmem:[#allocation3 + $0x48] sm:$0xff]
    %v192 = vld [vmem:[#allocation3 + $0x50] sm:$0xff]
    %v193 = vld [vmem:[#allocation3 + $0x58] sm:$0xff]
    %v194 = vld [vmem:[#allocation3 + $0x60] sm:$0xff]
    %v195 = vld [vmem:[#allocation3 + $0x68] sm:$0xff]
    %v196 = vld [vmem:[#allocation3 + $0x70] sm:$0xff]
    %v197 = vld [vmem:[#allocation3 + $0x78] sm:$0xff]
    %v198 = vld [vmem:[#allocation3 + $0x80] sm:$0xff]
    %v199 = vld [vmem:[#allocation3 + $0x88] sm:$0xff]
    %v200 = vld [vmem:[#allocation3 + $0x90] sm:$0xff]
    %v201 = vld [vmem:[#allocation3 + $0x98] sm:$0xff]
    %v202 = vld [vmem:[#allocation3 + $0xa0] sm:$0xff]
    %v203 = vld [vmem:[#allocation3 + $0xa8] sm:$0xff]
    %v204 = vld [vmem:[#allocation3 + $0xb0] sm:$0xff]
    %v205 = vld [vmem:[#allocation3 + $0xb8] sm:$0xff]
    %v206 = vld [vmem:[#allocation3 + $0xc0] sm:$0xff]
    %v207 = vld [vmem:[#allocation3 + $0xc8] sm:$0xff]
    %v208 = vld [vmem:[#allocation3 + $0xd0] sm:$0xff]
    %v209 = vld [vmem:[#allocation3 + $0xd8] sm:$0xff]
    %v210 = vld [vmem:[#allocation3 + $0xe0] sm:$0xff]
    %v211 = vld [vmem:[#allocation3 + $0xe8] sm:$0xff]
    %v212 = vld [vmem:[#allocation3 + $0xf0] sm:$0xff]
    %v213 = vld [vmem:[#allocation3 + $0xf8] sm:$0xff]
    %v214 = vld [vmem:[#allocation3 + $0x100] sm:$0xff]
    %v215 = vld [vmem:[#allocation3 + $0x108] sm:$0xff]
    %v216 = vld [vmem:[#allocation3 + $0x110] sm:$0xff]
    %v217 = vld [vmem:[#allocation3 + $0x118] sm:$0xff]
    %v218 = vld [vmem:[#allocation3 + $0x120] sm:$0xff]
    %v219 = vld [vmem:[#allocation3 + $0x128] sm:$0xff]
    %v220 = vld [vmem:[#allocation3 + $0x130] sm:$0xff]
    %v221 = vld [vmem:[#allocation3 + $0x138] sm:$0xff]
    %v222 = vld [vmem:[#allocation3 + $0x140] sm:$0xff]
    %v223 = vld [vmem:[#allocation3 + $0x148] sm:$0xff]
    %v224 = vld [vmem:[#allocation3 + $0x150] sm:$0xff]
    %v225 = vld [vmem:[#allocation3 + $0x158] sm:$0xff]
    %v226 = vld [vmem:[#allocation3 + $0x160] sm:$0xff]
    %v227 = vld [vmem:[#allocation3 + $0x168] sm:$0xff]
    %v228 = vld [vmem:[#allocation3 + $0x170] sm:$0xff]
    %v229 = vld [vmem:[#allocation3 + $0x178] sm:$0xff]
    %v230 = vld [vmem:[#allocation3 + $0x180] sm:$0xff]
    %v231 = vld [vmem:[#allocation3 + $0x188] sm:$0xff]
    %v232 = vld [vmem:[#allocation3 + $0x190] sm:$0xff]
    %v233 = vld [vmem:[#allocation3 + $0x198] sm:$0xff]
    %v234 = vld [vmem:[#allocation3 + $0x1a0] sm:$0xff]
    %v235 = vld [vmem:[#allocation3 + $0x1a8] sm:$0xff]
    %v236 = vld [vmem:[#allocation3 + $0x1b0] sm:$0xff]
    %v237 = vld [vmem:[#allocation3 + $0x1b8] sm:$0xff]
    %v238 = vld [vmem:[#allocation3 + $0x1c0] sm:$0xff]
    %v239 = vld [vmem:[#allocation3 + $0x1c8] sm:$0xff]
    %v240 = vld [vmem:[#allocation3 + $0x1d0] sm:$0xff]
    %v241 = vld [vmem:[#allocation3 + $0x1d8] sm:$0xff]
    %v242 = vld [vmem:[#allocation3 + $0x1e0] sm:$0xff]
    %v243 = vld [vmem:[#allocation3 + $0x1e8] sm:$0xff]
    %v244 = vld [vmem:[#allocation3 + $0x1f0] sm:$0xff]
    %v245 = vld [vmem:[#allocation3 + $0x1f8] sm:$0xff]
    %v246 = vld [vmem:[#allocation3 + $0x200] sm:$0xff]
    %v247 = vld [vmem:[#allocation3 + $0x208] sm:$0xff]
    %v248 = vld [vmem:[#allocation3 + $0x210] sm:$0xff]
    %v249 = vld [vmem:[#allocation3 + $0x218] sm:$0xff]
    %v250 = vld [vmem:[#allocation3 + $0x220] sm:$0xff]
    %v251 = vld [vmem:[#allocation3 + $0x228] sm:$0xff]
    %v252 = vld [vmem:[#allocation3 + $0x230] sm:$0xff]
    %v253 = vld [vmem:[#allocation3 + $0x238] sm:$0xff]
    %v254 = vld [vmem:[#allocation3 + $0x240] sm:$0xff]
    %v255 = vld [vmem:[#allocation3 + $0x248] sm:$0xff]
    %v256 = vld [vmem:[#allocation3 + $0x250] sm:$0xff]
    %v257 = vld [vmem:[#allocation3 + $0x258] sm:$0xff]
    %v258 = vld [vmem:[#allocation3 + $0x260] sm:$0xff]
    %v259 = vld [vmem:[#allocation3 + $0x268] sm:$0xff]
    %v260 = vld [vmem:[#allocation3 + $0x270] sm:$0xff]
    %v261 = vld [vmem:[#allocation3 + $0x278] sm:$0xff]
    %262 = vmatpush.msra.mxu0 %v197
    %263 = vmatpush.msra.mxu0 %v196
    %264 = vmatpush.msra.mxu0 %v195
    %265 = vmatpush.msra.mxu0 %v194
    %266 = vmatpush.msra.mxu0 %v193
    %267 = vmatpush.msra.mxu0 %v192
    %268 = vmatpush.msra.mxu0 %v191
    %269 = vmatpush.msra.mxu0 %v190
    %270 = vmatpush.msra.mxu0 %v189
    %271 = vmatpush.msra.mxu0 %v188
    %272 = vmatpush.msra.mxu0 %v187
    %273 = vmatpush.msra.mxu0 %v186
    %274 = vmatpush.msra.mxu0 %v185
    %275 = vmatpush.msra.mxu0 %v184
    %276 = vmatpush.msra.mxu0 %v183
    %277 = vmatpush.msra.mxu0 %v182
    %278 = vmatmul.f32.gmra.mxu0 %v162
    %v279 = vpop.f32.mrf.mxu0
    %v280 = vadd.f32 0.0, %v279
    %281 = vmatmul.f32.gmra.mxu0 %v167
    %v282 = vpop.f32.mrf.mxu0
    %v283 = vadd.f32 0.0, %v282
    %284 = vmatmul.f32.gmra.mxu0 %v172
    %v285 = vpop.f32.mrf.mxu0
    %v286 = vadd.f32 0.0, %v285
    %287 = vmatmul.f32.gmra.mxu0 %v177
    %v288 = vpop.f32.mrf.mxu0
    %v289 = vadd.f32 0.0, %v288
    %290 = vdwg.mxu0
    %291 = vmatpush.msra.mxu0 %v213
    %292 = vmatpush.msra.mxu0 %v212
    %293 = vmatpush.msra.mxu0 %v211
    %294 = vmatpush.msra.mxu0 %v210
    %295 = vmatpush.msra.mxu0 %v209
    %296 = vmatpush.msra.mxu0 %v208
    %297 = vmatpush.msra.mxu0 %v207
    %298 = vmatpush.msra.mxu0 %v206
    %299 = vmatpush.msra.mxu0 %v205
    %300 = vmatpush.msra.mxu0 %v204
    %301 = vmatpush.msra.mxu0 %v203
    %302 = vmatpush.msra.mxu0 %v202
    %303 = vmatpush.msra.mxu0 %v201
    %304 = vmatpush.msra.mxu0 %v200
    %305 = vmatpush.msra.mxu0 %v199
    %306 = vmatpush.msra.mxu0 %v198
    %307 = vmatmul.f32.gmra.mxu0 %v163
    %v308 = vpop.f32.mrf.mxu0
    %v309 = vadd.f32 %v280, %v308
    %310 = vmatmul.f32.gmra.mxu0 %v168
    %v311 = vpop.f32.mrf.mxu0
    %v312 = vadd.f32 %v283, %v311
    %313 = vmatmul.f32.gmra.mxu0 %v173
    %v314 = vpop.f32.mrf.mxu0
    %v315 = vadd.f32 %v286, %v314
    %316 = vmatmul.f32.gmra.mxu0 %v178
    %v317 = vpop.f32.mrf.mxu0
    %v318 = vadd.f32 %v289, %v317
    %319 = vdwg.mxu0
    %320 = vmatpush.msra.mxu0 %v229
    %321 = vmatpush.msra.mxu0 %v228
    %322 = vmatpush.msra.mxu0 %v227
    %323 = vmatpush.msra.mxu0 %v226
    %324 = vmatpush.msra.mxu0 %v225
    %325 = vmatpush.msra.mxu0 %v224
    %326 = vmatpush.msra.mxu0 %v223
    %327 = vmatpush.msra.mxu0 %v222
    %328 = vmatpush.msra.mxu0 %v221
    %329 = vmatpush.msra.mxu0 %v220
    %330 = vmatpush.msra.mxu0 %v219
    %331 = vmatpush.msra.mxu0 %v218
    %332 = vmatpush.msra.mxu0 %v217
    %333 = vmatpush.msra.mxu0 %v216
    %334 = vmatpush.msra.mxu0 %v215
    %335 = vmatpush.msra.mxu0 %v214
    %336 = vmatmul.f32.gmra.mxu0 %v164
    %v337 = vpop.f32.mrf.mxu0
    %v338 = vadd.f32 %v309, %v337
    %339 = vmatmul.f32.gmra.mxu0 %v169
    %v340 = vpop.f32.mrf.mxu0
    %v341 = vadd.f32 %v312, %v340
    %342 = vmatmul.f32.gmra.mxu0 %v174
    %v343 = vpop.f32.mrf.mxu0
    %v344 = vadd.f32 %v315, %v343
    %345 = vmatmul.f32.gmra.mxu0 %v179
    %v346 = vpop.f32.mrf.mxu0
    %v347 = vadd.f32 %v318, %v346
    %348 = vdwg.mxu0
    %349 = vmatpush.msra.mxu0 %v245
    %350 = vmatpush.msra.mxu0 %v244
    %351 = vmatpush.msra.mxu0 %v243
    %352 = vmatpush.msra.mxu0 %v242
    %353 = vmatpush.msra.mxu0 %v241
    %354 = vmatpush.msra.mxu0 %v240
    %355 = vmatpush.msra.mxu0 %v239
    %356 = vmatpush.msra.mxu0 %v238
    %357 = vmatpush.msra.mxu0 %v237
    %358 = vmatpush.msra.mxu0 %v236
    %359 = vmatpush.msra.mxu0 %v235
    %360 = vmatpush.msra.mxu0 %v234
    %361 = vmatpush.msra.mxu0 %v233
    %362 = vmatpush.msra.mxu0 %v232
    %363 = vmatpush.msra.mxu0 %v231
    %364 = vmatpush.msra.mxu0 %v230
    %365 = vmatmul.f32.gmra.mxu0 %v165
    %v366 = vpop.f32.mrf.mxu0
    %v367 = vadd.f32 %v338, %v366
    %368 = vmatmul.f32.gmra.mxu0 %v170
    %v369 = vpop.f32.mrf.mxu0
    %v370 = vadd.f32 %v341, %v369
    %371 = vmatmul.f32.gmra.mxu0 %v175
    %v372 = vpop.f32.mrf.mxu0
    %v373 = vadd.f32 %v344, %v372
    %374 = vmatmul.f32.gmra.mxu0 %v180
    %v375 = vpop.f32.mrf.mxu0
    %v376 = vadd.f32 %v347, %v375
    %377 = vdwg.mxu0
    %378 = vmatpush.msra.mxu0 %v261
    %379 = vmatpush.msra.mxu0 %v260
    %380 = vmatpush.msra.mxu0 %v259
    %381 = vmatpush.msra.mxu0 %v258
    %382 = vmatpush.msra.mxu0 %v257
    %383 = vmatpush.msra.mxu0 %v256
    %384 = vmatpush.msra.mxu0 %v255
    %385 = vmatpush.msra.mxu0 %v254
    %386 = vmatpush.msra.mxu0 %v253
    %387 = vmatpush.msra.mxu0 %v252
    %388 = vmatpush.msra.mxu0 %v251
    %389 = vmatpush.msra.mxu0 %v250
    %390 = vmatpush.msra.mxu0 %v249
    %391 = vmatpush.msra.mxu0 %v248
    %392 = vmatpush.msra.mxu0 %v247
    %393 = vmatpush.msra.mxu0 %v246
    %394 = vmatmul.f32.gmra.mxu0 %v166
    %v395 = vpop.f32.mrf.mxu0
    %v396 = vadd.f32 %v367, %v395
    %397 = vmatmul.f32.gmra.mxu0 %v171
    %v398 = vpop.f32.mrf.mxu0
    %v399 = vadd.f32 %v370, %v398
    %400 = vmatmul.f32.gmra.mxu0 %v176
    %v401 = vpop.f32.mrf.mxu0
    %v402 = vadd.f32 %v373, %v401
    %403 = vmatmul.f32.gmra.mxu0 %v181
    %v404 = vpop.f32.mrf.mxu0
    %v405 = vadd.f32 %v376, %v404
    %406 = vdwg.mxu0
    %v407 = vmax.f32 %v396, 0.0
    %v408 = vmax.f32 %v399, 0.0
    %v409 = vmax.f32 %v402, 0.0
    %v410 = vmax.f32 %v405, 0.0
    %v411 = vld [vmem:[%s2] sm:$0xff]
    %v412 = vld [vmem:[%s2 + $0x8] sm:$0xff]
    %v413 = vld [vmem:[%s2 + $0x10] sm:$0xff]
    %v414 = vld [vmem:[%s2 + $0x18] sm:$0xff]
    %v415 = vmul.f32 %v407, %v411
    %v416 = vmul.f32 %v408, %v412
    %v417 = vmul.f32 %v409, %v413
    %v418 = vmul.f32 %v410, %v414
    %v419 = vmax.f32 %v415, %v416
    %v420 = vrot.slane %v419, 4
    %v421 = vmax.f32 %v419, %v420
    %v422 = vrot.slane %v421, 2
    %v423 = vmax.f32 %v421, %v422
    %v424 = vrot.slane %v423, 1
    %v425 = vmax.f32 %v423, %v424
    %v426 = vmax.f32 %v417, %v418
    %v427 = vrot.slane %v426, 4
    %v428 = vmax.f32 %v426, %v427
    %v429 = vrot.slane %v428, 2
    %v430 = vmax.f32 %v428, %v429
    %v431 = vrot.slane %v430, 1
    %v432 = vmax.f32 %v430, %v431
    %v433 = vld [vmem:[%s3] sm:$0xff]
    %v434 = vld [vmem:[%s3 + $0x8] sm:$0xff]
    %v435 = vld [vmem:[%s3 + $0x10] sm:$0xff]
    %v436 = vld [vmem:[%s3 + $0x18] sm:$0xff]
    %v437 = vld [vmem:[%s3 + $0x20] sm:$0xff]
    %v438 = vld [vmem:[%s3 + $0x28] sm:$0xff]
    %v439 = vld [vmem:[%s3 + $0x30] sm:$0xff]
    %v440 = vld [vmem:[%s3 + $0x38] sm:$0xff]
    %v441 = vld [vmem:[%s3 + $0x40] sm:$0xff]
    %v442 = vld [vmem:[%s3 + $0x48] sm:$0xff]
    %v443 = vld [vmem:[%s3 + $0x50] sm:$0xff]
    %v444 = vld [vmem:[%s3 + $0x58] sm:$0xff]
    %v445 = vld [vmem:[%s3 + $0x60] sm:$0xff]
    %v446 = vld [vmem:[%s3 + $0x68] sm:$0xff]
    %v447 = vld [vmem:[%s3 + $0x70] sm:$0xff]
    %v448 = vld [vmem:[%s3 + $0x78] sm:$0xff]
    %v449 = vld [vmem:[%s4] sm:$0x1]
    %v451 = vperm.slane %v449, 0
    %vm455 = vcmask 1041409
    %v456 = vsel %vm455, %v432, %v425
    %458 = vmatpush.msra.mxu0 %v448
    %459 = vmatpush.msra.mxu0 %v447
    %460 = vmatpush.msra.mxu0 %v446
    %461 = vmatpush.msra.mxu0 %v445
    %462 = vmatpush.msra.mxu0 %v444
    %463 = vmatpush.msra.mxu0 %v443
    %464 = vmatpush.msra.mxu0 %v442
    %465 = vmatpush.msra.mxu0 %v441
    %466 = vmatpush.msra.mxu0 %v440
    %467 = vmatpush.msra.mxu0 %v439
    %468 = vmatpush.msra.mxu0 %v438
    %469 = vmatpush.msra.mxu0 %v437
    %470 = vmatpush.msra.mxu0 %v436
    %471 = vmatpush.msra.mxu0 %v435
    %472 = vmatpush.msra.mxu0 %v434
    %473 = vmatpush.msra.mxu0 %v433
    %474 = vmatmul.f32.gmra.mxu0 %v456
    %v475 = vpop.f32.mrf.mxu0
    %v476 = vadd.f32 %v451, %v475
    %477 = vdwg.mxu0
    %vm478 = vcmask 9216
    %479 = vst.msk [vmem:[#allocation6] sm:$0x3] %vm478, %v476
    // Predicated region
    $region26: #{textcnn_forward.1} parent=1 // pred_check
      _
    $region27: #{textcnn_forward.1} parent=1 // pred_check_branch
      %481 = sbr.rel (0) target = $region29
    $region28: #{textcnn_forward.1} parent=1 // pred_region
      %483 = vsyncadd [#allocation5], 0
      %s485 = sshll.u32 [#allocation6], 4
      %s486 = int_to_ptr.vmem [resolvable:$true] %s485
      %s487 = sshll.u32 %s5, 4
      %s488 = int_to_ptr.hbm [resolvable:$true] %s487
      %490 = dma.vmem_to_hbm [thread:$0]  %s486, 32, %s488, [#allocation5]
    $region29: #{textcnn_forward.1} parent=1 // pred_fallthru
      _
    // Predicated region
    $region30: #{textcnn_forward.1} parent=1 // pred_check
      _
    $region31: #{textcnn_forward.1} parent=1 // pred_check_branch
      %492 = sbr.rel (0) target = $region33
    $region32: #{textcnn_forward.1} parent=1 // pred_region
      %494 = dma.done [#allocation5], 32
    $region33: #{textcnn_forward.1} parent=1 // pred_fallthru
      _
    %495 = vsyncpa [#allocation4], 1
    %496 = vsyncpa [#allocation5], 1

</llo_original>
